<compile_context>
chip_gen: v7x
topology: tpu7x:2x2x1
jax: 0.10.0
libtpu: 0.0.40
codegen_flags: <defaults>
</compile_context>

<pallas_src>
import functools

import jax
import jax.numpy as jnp
from jax.experimental import pallas as pl
from jax.experimental.pallas import tpu as pltpu

LN_EPS = 1e-5  # torch nn.LayerNorm default


def _round_up(x: int, m: int) -> int:
    return ((x + m - 1) // m) * m


def self_output_kernel(h_ref, x_ref, w_ref, b_ref, g_ref, beta_ref, o_ref,
                       *, hidden: int, eps: float):
    # dense: y = h @ W^T + b  (weight passed pre-transposed as [in, out], bf16 on the MXU,
    # f32 accumulation)
    y = jnp.dot(h_ref[...], w_ref[...], preferred_element_type=jnp.float32)
    y = y + b_ref[...]
    # TODO(synk): dropout is identity in eval mode; training-mode dropout not implemented.
    z = y + x_ref[...].astype(jnp.float32)

    hp = z.shape[-1]               # padded (lane-dense) hidden size
    inv_h = jnp.float32(1.0 / hidden)

    if hp != hidden:
        lane = jax.lax.broadcasted_iota(jnp.int32, (1, hp), 1)
        lane_mask = lane < hidden
        z = jnp.where(lane_mask, z, 0.0)   # padded lanes contribute 0 to the LN stats

    # LayerNorm over the real `hidden` lanes only (biased variance, eps inside rsqrt)
    mean = jnp.sum(z, axis=-1, keepdims=True) * inv_h
    cent = z - mean
    if hp != hidden:
        cent = jnp.where(lane_mask, cent, 0.0)
    var = jnp.sum(cent * cent, axis=-1, keepdims=True) * inv_h
    zn = cent * jax.lax.rsqrt(var + eps)
    o_ref[...] = (zn * g_ref[...] + beta_ref[...]).astype(o_ref.dtype)


def prepare_weight(weight):
    """One-time parameter prep (do this at init, NOT per call):
    torch layout [out, in] -> transposed [in, out] and cast to bf16 for the MXU."""
    return jnp.asarray(weight).T.astype(jnp.bfloat16)


def self_output(hidden_states, input_tensor, weight_t_bf16, bias, gamma, beta,
                *, tm=256, eps=LN_EPS):
    """hidden_states, input_tensor: [B, S, H]; weight_t_bf16: [H, H] pre-transposed
    ([in, out]) bf16 weight produced once by prepare_weight()."""
    B, S, H = hidden_states.shape
    rows = B * S

    # Tile sizing: big MXU-friendly row tiles, padded grid (no divisibility requirement),
    # lane-dense (multiple-of-128) hidden dim.
    tm = min(tm, _round_up(rows, 8))
    rows_p = _round_up(rows, tm)
    Hp = _round_up(H, 128)

    h2 = hidden_states.reshape(rows, H).astype(jnp.bfloat16)   # bf16 MXU operand
    x2 = input_tensor.reshape(rows, H).astype(jnp.float32)     # residual kept in f32
    if rows_p != rows or Hp != H:
        h2 = jnp.pad(h2, ((0, rows_p - rows), (0, Hp - H)))
        x2 = jnp.pad(x2, ((0, rows_p - rows), (0, Hp - H)))

    wt = weight_t_bf16
    if wt.shape != (Hp, Hp):
        wt = jnp.pad(wt, ((0, Hp - wt.shape[0]), (0, Hp - wt.shape[1])))

    b2 = jnp.pad(bias.astype(jnp.float32), (0, Hp - H)).reshape(1, Hp)
    g2 = jnp.pad(gamma.astype(jnp.float32), (0, Hp - H)).reshape(1, Hp)
    be2 = jnp.pad(beta.astype(jnp.float32), (0, Hp - H)).reshape(1, Hp)

    # Explicit scoped-VMEM budget: resident bf16 weight + double-buffered row tiles.
    # (For very large H on v7x's 64 MiB VMEM, single-buffer the weight or K-tile it.)
    vmem_est = (
        Hp * Hp * 2 * 2          # weight (bf16), worst-case double-buffered
        + 2 * tm * Hp * 2        # hidden_states tiles (bf16) x2 buffers
        + 2 * tm * Hp * 4        # input_tensor tiles (f32) x2 buffers
        + 2 * tm * Hp * 4        # output tiles (f32) x2 buffers
        + 6 * Hp * 4             # bias / gamma / beta
    )
    vmem_limit = int(min(max(2 * vmem_est + (2 << 20), 16 << 20), 64 << 20))

    out = pl.pallas_call(
        functools.partial(self_output_kernel, hidden=H, eps=eps),
        out_shape=jax.ShapeDtypeStruct((rows_p, Hp), hidden_states.dtype),
        grid_spec=pltpu.PrefetchScalarGridSpec(
            num_scalar_prefetch=0,
            grid=(rows_p // tm,),
            in_specs=[
                pl.BlockSpec((tm, Hp), lambda i: (i, 0)),   # hidden_states rows (bf16)
                pl.BlockSpec((tm, Hp), lambda i: (i, 0)),   # residual rows (f32)
                pl.BlockSpec((Hp, Hp), lambda i: (0, 0)),   # weight [in, out] (bf16, resident)
                pl.BlockSpec((1, Hp), lambda i: (0, 0)),    # bias
                pl.BlockSpec((1, Hp), lambda i: (0, 0)),    # LN gamma
                pl.BlockSpec((1, Hp), lambda i: (0, 0)),    # LN beta
            ],
            out_specs=pl.BlockSpec((tm, Hp), lambda i: (i, 0)),
        ),
        compiler_params=pltpu.CompilerParams(
            dimension_semantics=("parallel",),   # row tiles shard across TCs on v7x
            vmem_limit_bytes=vmem_limit),
    )(h2, x2, wt, b2, g2, be2)

    return out[:rows, :H].reshape(B, S, H)


def reference(hidden_states, input_tensor, weight, bias, gamma, beta):
    y = jnp.einsum("bsh,oh->bso", hidden_states, weight) + bias
    z = y + input_tensor
    mean = jnp.mean(z, axis=-1, keepdims=True)
    var = jnp.mean((z - mean) ** 2, axis=-1, keepdims=True)
    return (z - mean) / jnp.sqrt(var + LN_EPS) * gamma + beta


if __name__ == "__main__":
    B, S, H = 2, 8, 32
    key = jax.random.PRNGKey(0)
    k1, k2, k3, k4 = jax.random.split(key, 4)

    hidden_states = jax.random.normal(k1, (B, S, H), dtype=jnp.float32)
    input_tensor = jax.random.normal(k2, (B, S, H), dtype=jnp.float32)
    # deterministic "init": linear weight/bias ~ N(0, 0.02), LN gamma=1, beta=0
    weight = 0.02 * jax.random.normal(k3, (H, H), dtype=jnp.float32)   # torch layout [out, in]
    bias = 0.02 * jax.random.normal(k4, (H,), dtype=jnp.float32)
    gamma = jnp.ones((H,), dtype=jnp.float32)
    beta = jnp.zeros((H,), dtype=jnp.float32)

    # One-time param prep (outside the per-call path): transpose + bf16 cast.
    weight_t = prepare_weight(weight)

    out = self_output(hidden_states, input_tensor, weight_t, bias, gamma, beta)
    out = jax.block_until_ready(out)

    ref = reference(hidden_states, input_tensor, weight, bias, gamma, beta)
    assert out.shape == (B, S, H)
    # bf16 MXU inputs with f32 accumulation / f32 LayerNorm -> loosened tolerance.
    assert jnp.allclose(out, ref, atol=1e-2, rtol=1e-2), float(jnp.max(jnp.abs(out - ref)))

    # Second shape exercising the row-padding path (rows not a multiple of the tile).
    B2, S2, H2 = 3, 5, 40
    kk = jax.random.split(jax.random.PRNGKey(1), 4)
    hs2 = jax.random.normal(kk[0], (B2, S2, H2), dtype=jnp.float32)
    it2 = jax.random.normal(kk[1], (B2, S2, H2), dtype=jnp.float32)
    w2 = 0.02 * jax.random.normal(kk[2], (H2, H2), dtype=jnp.float32)
    bb2 = 0.02 * jax.random.normal(kk[3], (H2,), dtype=jnp.float32)
    g2 = jnp.ones((H2,), dtype=jnp.float32)
    be2 = jnp.zeros((H2,), dtype=jnp.float32)
    out2 = jax.block_until_ready(
        self_output(hs2, it2, prepare_weight(w2), bb2, g2, be2))
    ref2 = reference(hs2, it2, w2, bb2, g2, be2)
    assert out2.shape == (B2, S2, H2)
    assert jnp.allclose(out2, ref2, atol=1e-2, rtol=1e-2), float(jnp.max(jnp.abs(out2 - ref2)))

    print("KERNEL_OK")
</pallas_src>

<mosaic_0001>
module attributes {stable_mosaic.version = 11 : i64} {
  func.func @self_output_kernel(%arg0: i32, %arg1: memref<16x128xbf16, #tpu.memory_space<vmem>>, %arg2: memref<16x128xf32, #tpu.memory_space<vmem>>, %arg3: memref<128x128xbf16, #tpu.memory_space<vmem>>, %arg4: memref<1x128xf32, #tpu.memory_space<vmem>>, %arg5: memref<1x128xf32, #tpu.memory_space<vmem>>, %arg6: memref<1x128xf32, #tpu.memory_space<vmem>>, %arg7: memref<16x128xf32, #tpu.memory_space<vmem>>) attributes {dimension_semantics = [#tpu.dimension_semantics<parallel>], iteration_bounds = array<i64: 1>, scalar_prefetch = 0 : i64, scratch_operands = 0 : i64, tpu.core_type = #tpu.core_type<tc>, window_params = [{transform_indices = @transform_0, window_bounds = array<i64: 16, 128>}, {transform_indices = @transform_1, window_bounds = array<i64: 16, 128>}, {pipeline_mode = #tpu.pipeline_mode<synchronous>, transform_indices = @transform_2, window_bounds = array<i64: 128, 128>}, {pipeline_mode = #tpu.pipeline_mode<synchronous>, transform_indices = @transform_3, window_bounds = array<i64: 1, 128>}, {pipeline_mode = #tpu.pipeline_mode<synchronous>, transform_indices = @transform_4, window_bounds = array<i64: 1, 128>}, {pipeline_mode = #tpu.pipeline_mode<synchronous>, transform_indices = @transform_5, window_bounds = array<i64: 1, 128>}, {transform_indices = @transform_6, window_bounds = array<i64: 16, 128>}]} {
    %c0 = arith.constant 0 : index
    %c0_0 = arith.constant 0 : index
    %0 = vector.load %arg1[%c0, %c0_0] : memref<16x128xbf16, #tpu.memory_space<vmem>>, vector<16x128xbf16>
    %c0_1 = arith.constant 0 : index
    %c0_2 = arith.constant 0 : index
    %1 = vector.load %arg3[%c0_1, %c0_2] : memref<128x128xbf16, #tpu.memory_space<vmem>>, vector<128x128xbf16>
    %cst = arith.constant dense<0.000000e+00> : vector<16x128xf32>
    %2 = tpu.matmul %0, %1, %cst {dimension_numbers = #tpu.dot_dimension_numbers<[1], [0], [0], [1], [0, 0, 1, 1], [], []>} : vector<16x128xbf16>, vector<128x128xbf16>, vector<16x128xf32> -> vector<16x128xf32>
    %c0_3 = arith.constant 0 : index
    %c0_4 = arith.constant 0 : index
    %3 = vector.load %arg4[%c0_3, %c0_4] : memref<1x128xf32, #tpu.memory_space<vmem>>, vector<1x128xf32>
    %4 = vector.broadcast %3 : vector<1x128xf32> to vector<16x128xf32>
    %5 = arith.addf %2, %4 : vector<16x128xf32>
    %c0_5 = arith.constant 0 : index
    %c0_6 = arith.constant 0 : index
    %6 = vector.load %arg2[%c0_5, %c0_6] : memref<16x128xf32, #tpu.memory_space<vmem>>, vector<16x128xf32>
    %7 = arith.addf %5, %6 : vector<16x128xf32>
    %8 = tpu.iota {dimensions = array<i32: 1>} : vector<1x128xi32>
    %c32_i32 = arith.constant 32 : i32
    %9 = vector.broadcast %c32_i32 : i32 to vector<1x128xi32>
    %10 = arith.cmpi slt, %8, %9 : vector<1x128xi32>
    %cst_7 = arith.constant 0.000000e+00 : f32
    %11 = vector.shape_cast %10 : vector<1x128xi1> to vector<1x128xi1>
    %12 = vector.broadcast %11 : vector<1x128xi1> to vector<16x128xi1>
    %13 = vector.broadcast %cst_7 : f32 to vector<16x128xf32>
    %14 = arith.select %12, %7, %13 : vector<16x128xi1>, vector<16x128xf32>
    %cst_8 = arith.constant dense<0.000000e+00> : vector<16xf32>
    %15 = vector.multi_reduction <add>, %14, %cst_8 [1] : vector<16x128xf32> to vector<16xf32>
    %16 = vector.shape_cast %15 : vector<16xf32> to vector<16x1xf32>
    %cst_9 = arith.constant 3.125000e-02 : f32
    %17 = vector.broadcast %cst_9 : f32 to vector<16x1xf32>
    %18 = arith.mulf %16, %17 : vector<16x1xf32>
    %19 = vector.broadcast %18 : vector<16x1xf32> to vector<16x128xf32>
    %20 = arith.subf %14, %19 : vector<16x128xf32>
    %cst_10 = arith.constant 0.000000e+00 : f32
    %21 = vector.shape_cast %10 : vector<1x128xi1> to vector<1x128xi1>
    %22 = vector.broadcast %21 : vector<1x128xi1> to vector<16x128xi1>
    %23 = vector.broadcast %cst_10 : f32 to vector<16x128xf32>
    %24 = arith.select %22, %20, %23 : vector<16x128xi1>, vector<16x128xf32>
    %25 = arith.mulf %24, %24 : vector<16x128xf32>
    %cst_11 = arith.constant dense<0.000000e+00> : vector<16xf32>
    %26 = vector.multi_reduction <add>, %25, %cst_11 [1] : vector<16x128xf32> to vector<16xf32>
    %27 = vector.shape_cast %26 : vector<16xf32> to vector<16x1xf32>
    %cst_12 = arith.constant 3.125000e-02 : f32
    %28 = vector.broadcast %cst_12 : f32 to vector<16x1xf32>
    %29 = arith.mulf %27, %28 : vector<16x1xf32>
    %cst_13 = arith.constant 9.99999974E-6 : f32
    %30 = vector.broadcast %cst_13 : f32 to vector<16x1xf32>
    %31 = arith.addf %29, %30 : vector<16x1xf32>
    %32 = math.rsqrt %31 : vector<16x1xf32>
    %33 = vector.broadcast %32 : vector<16x1xf32> to vector<16x128xf32>
    %34 = arith.mulf %24, %33 : vector<16x128xf32>
    %c0_14 = arith.constant 0 : index
    %c0_15 = arith.constant 0 : index
    %35 = vector.load %arg5[%c0_14, %c0_15] : memref<1x128xf32, #tpu.memory_space<vmem>>, vector<1x128xf32>
    %36 = vector.broadcast %35 : vector<1x128xf32> to vector<16x128xf32>
    %37 = arith.mulf %34, %36 : vector<16x128xf32>
    %c0_16 = arith.constant 0 : index
    %c0_17 = arith.constant 0 : index
    %38 = vector.load %arg6[%c0_16, %c0_17] : memref<1x128xf32, #tpu.memory_space<vmem>>, vector<1x128xf32>
    %39 = vector.broadcast %38 : vector<1x128xf32> to vector<16x128xf32>
    %40 = arith.addf %37, %39 : vector<16x128xf32>
    %c0_18 = arith.constant 0 : index
    %c0_19 = arith.constant 0 : index
    %41 = vector.load %arg7[%c0_18, %c0_19] : memref<16x128xf32, #tpu.memory_space<vmem>>, vector<16x128xf32>
    tpu.vector_store %arg7[%c0_18, %c0_19], %40 {strides = array<i32>} : memref<16x128xf32, #tpu.memory_space<vmem>>, vector<16x128xf32>,
    return
  }
  func.func @transform_0(%arg0: i32) -> (i32, i32) {
    %c0_i32 = arith.constant 0 : i32
    %c0_i32_0 = arith.constant 0 : i32
    return %arg0, %c0_i32 : i32, i32
  }
  func.func @transform_1(%arg0: i32) -> (i32, i32) {
    %c0_i32 = arith.constant 0 : i32
    %c0_i32_0 = arith.constant 0 : i32
    return %arg0, %c0_i32 : i32, i32
  }
  func.func @transform_2(%arg0: i32) -> (i32, i32) {
    %c0_i32 = arith.constant 0 : i32
    %c0_i32_0 = arith.constant 0 : i32
    %c0_i32_1 = arith.constant 0 : i32
    return %c0_i32, %c0_i32_0 : i32, i32
  }
  func.func @transform_3(%arg0: i32) -> (i32, i32) {
    %c0_i32 = arith.constant 0 : i32
    %c0_i32_0 = arith.constant 0 : i32
    %c0_i32_1 = arith.constant 0 : i32
    return %c0_i32, %c0_i32_0 : i32, i32
  }
  func.func @transform_4(%arg0: i32) -> (i32, i32) {
    %c0_i32 = arith.constant 0 : i32
    %c0_i32_0 = arith.constant 0 : i32
    %c0_i32_1 = arith.constant 0 : i32
    return %c0_i32, %c0_i32_0 : i32, i32
  }
  func.func @transform_5(%arg0: i32) -> (i32, i32) {
    %c0_i32 = arith.constant 0 : i32
    %c0_i32_0 = arith.constant 0 : i32
    %c0_i32_1 = arith.constant 0 : i32
    return %c0_i32, %c0_i32_0 : i32, i32
  }
  func.func @transform_6(%arg0: i32) -> (i32, i32) {
    %c0_i32 = arith.constant 0 : i32
    %c0_i32_0 = arith.constant 0 : i32
    return %arg0, %c0_i32 : i32, i32
  }
}

</mosaic_0001>

<llo_original>
// kernel: tpu_custom_call.1
$region0: #{tpu_custom_call.1}
  #allocation0 [shape = 'u32[]', space=smem, size = 0x4, offset = 0x4, fixed_abs, tag = 'smem constant byte address 0x4 - core index']
  #allocation1 [shape = 'u32[144,128]{1,0:T(1,128)}', space=vmem, size = 0x12000, scoped, tag = 'internal scratch']
  %s0 = inlined_call_operand.hbm [shape: bf16[16,128], index: 0, kind: input, shape index: {}]
  %s1 = inlined_call_operand.hbm [shape: f32[16,128], index: 1, kind: input, shape index: {}]
  %s2 = inlined_call_operand.hbm [shape: bf16[128,128], index: 2, kind: input, shape index: {}]
  %s3 = inlined_call_operand.vmem [shape: f32[1,128], index: 3, kind: input, shape index: {}]
  %s4 = inlined_call_operand.vmem [shape: f32[1,128], index: 4, kind: input, shape index: {}]
  %s5 = inlined_call_operand.vmem [shape: f32[1,128], index: 5, kind: input, shape index: {}]
  %s6 = inlined_call_operand.hbm [shape: f32[16,128], index: 6, kind: output, shape index: {}]
  %s7 = sld [smem:[#allocation0]]
  $region46: #{tpu_custom_call.1} parent=0
    _
  %s9 = ssub.s32 1, %s7
  %s10 = scalar_select 0, %s9, %s7
  $region1: #{tpu_custom_call.1} parent=0
    #allocation2 [shape = 'u8[4096]{0}', space=vmem, size = 0x1000, scoped, tag = 'input window, operand 0, single buffered']
    #allocation3 [shape = 's32[1]{0}', space=sflag, size = 0x4, scoped, tag = 'scoped memory for tpu_custom_call.1']
    #allocation4 [shape = 's32[1]{0}', space=sflag, size = 0x4, scoped, tag = 'scoped memory for tpu_custom_call.1']
    #allocation5 [shape = 'u8[8192]{0}', space=vmem, size = 0x2000, scoped, tag = 'input window, operand 1, single buffered']
    #allocation6 [shape = 's32[1]{0}', space=sflag, size = 0x4, scoped, tag = 'scoped memory for tpu_custom_call.1']
    #allocation7 [shape = 'u8[32768]{0}', space=vmem, size = 0x8000, scoped, tag = 'input window, operand 2, single buffered']
    #allocation8 [shape = 'u8[8192]{0}', space=vmem, size = 0x2000, scoped, tag = 'output window, operand 0, single buffered']
    %11 = vsyncpa [#allocation3], 0
    %12 = vsyncpa [#allocation6], 0
    %13 = vsyncpa [#allocation4], 0
    // Predicated region
    $region2: #{tpu_custom_call.1} parent=1 // pred_check
      _
    $region3: #{tpu_custom_call.1} parent=1 // pred_check_branch
      %15 = sbr.rel (0) target = $region5
    $region4: #{tpu_custom_call.1} parent=1 // pred_region
      %s17 = ssub.s32 128, 128
      %18 = vsyncadd [#allocation3], %s17
      %s19 = sshll.u32 [#allocation2], 4
      %s20 = int_to_ptr.vmem [resolvable:$true] %s19
      %25 = dma.hbm_to_vmem [thread:$0]  %s0, 128, %s20, [#allocation3], 64, 64, 4
    $region5: #{tpu_custom_call.1} parent=1 // pred_fallthru
      _
    // Predicated region
    $region6: #{tpu_custom_call.1} parent=1 // pred_check
      _
    $region7: #{tpu_custom_call.1} parent=1 // pred_check_branch
      %27 = sbr.rel (0) target = $region9
    $region8: #{tpu_custom_call.1} parent=1 // pred_region
      %s29 = ssub.s32 256, 256
      %30 = vsyncadd [#allocation6], %s29
      %s31 = sshll.u32 [#allocation5], 4
      %s32 = int_to_ptr.vmem [resolvable:$true] %s31
      %37 = dma.hbm_to_vmem [thread:$0]  %s1, 256, %s32, [#allocation6], 128, 128, 8
    $region9: #{tpu_custom_call.1} parent=1 // pred_fallthru
      _
    // Predicated region
    $region10: #{tpu_custom_call.1} parent=1 // pred_check
      _
    $region11: #{tpu_custom_call.1} parent=1 // pred_check_branch
      %39 = sbr.rel (0) target = $region13
    $region12: #{tpu_custom_call.1} parent=1 // pred_region
      %s41 = ssub.s32 1024, 1024
      %42 = vsyncadd [#allocation6], %s41
      %s43 = sshll.u32 [#allocation7], 4
      %s44 = int_to_ptr.vmem [resolvable:$true] %s43
      %49 = dma.hbm_to_vmem [thread:$0]  %s2, 1024, %s44, [#allocation6], 64, 64, 4
    $region13: #{tpu_custom_call.1} parent=1 // pred_fallthru
      _
    // Predicated region
    $region14: #{tpu_custom_call.1} parent=1 // pred_check
      _
    $region15: #{tpu_custom_call.1} parent=1 // pred_check_branch
      %51 = sbr.rel (0) target = $region17
    $region16: #{tpu_custom_call.1} parent=1 // pred_region
      _
    $region17: #{tpu_custom_call.1} parent=1 // pred_fallthru
      _
    // Predicated region
    $region18: #{tpu_custom_call.1} parent=1 // pred_check
      _
    $region19: #{tpu_custom_call.1} parent=1 // pred_check_branch
      %53 = sbr.rel (0) target = $region21
    $region20: #{tpu_custom_call.1} parent=1 // pred_region
      _
    $region21: #{tpu_custom_call.1} parent=1 // pred_fallthru
      _
    // Predicated region
    $region22: #{tpu_custom_call.1} parent=1 // pred_check
      _
    $region23: #{tpu_custom_call.1} parent=1 // pred_check_branch
      %55 = sbr.rel (0) target = $region25
    $region24: #{tpu_custom_call.1} parent=1 // pred_region
      _
    $region25: #{tpu_custom_call.1} parent=1 // pred_fallthru
      _
    // Predicated region
    $region26: #{tpu_custom_call.1} parent=1 // pred_check
      _
    $region27: #{tpu_custom_call.1} parent=1 // pred_check_branch
      %57 = sbr.rel (0) target = $region29
    $region28: #{tpu_custom_call.1} parent=1 // pred_region
      %58 = dma.done [#allocation3], 128
    $region29: #{tpu_custom_call.1} parent=1 // pred_fallthru
      _
    // Predicated region
    $region30: #{tpu_custom_call.1} parent=1 // pred_check
      _
    $region31: #{tpu_custom_call.1} parent=1 // pred_check_branch
      %60 = sbr.rel (0) target = $region33
    $region32: #{tpu_custom_call.1} parent=1 // pred_region
      %61 = dma.done [#allocation6], 256
    $region33: #{tpu_custom_call.1} parent=1 // pred_fallthru
      _
    // Predicated region
    $region34: #{tpu_custom_call.1} parent=1 // pred_check
      _
    $region35: #{tpu_custom_call.1} parent=1 // pred_check_branch
      %63 = sbr.rel (0) target = $region37
    $region36: #{tpu_custom_call.1} parent=1 // pred_region
      %64 = dma.done [#allocation6], 1024
    $region37: #{tpu_custom_call.1} parent=1 // pred_fallthru
      _
    %v66 = vld [vmem:[#allocation2] sm:$0xf]
    %v67 = vld [vmem:[#allocation2 + $0x4] sm:$0xf]
    %v68 = vld [vmem:[#allocation7] sm:$0xf]
    %v69 = vld [vmem:[#allocation7 + $0x4] sm:$0xf]
    %v70 = vld [vmem:[#allocation7 + $0x8] sm:$0xf]
    %v71 = vld [vmem:[#allocation7 + $0xc] sm:$0xf]
    %v72 = vld [vmem:[#allocation7 + $0x10] sm:$0xf]
    %v73 = vld [vmem:[#allocation7 + $0x14] sm:$0xf]
    %v74 = vld [vmem:[#allocation7 + $0x18] sm:$0xf]
    %v75 = vld [vmem:[#allocation7 + $0x1c] sm:$0xf]
    %v76 = vld [vmem:[#allocation7 + $0x20] sm:$0xf]
    %v77 = vld [vmem:[#allocation7 + $0x24] sm:$0xf]
    %v78 = vld [vmem:[#allocation7 + $0x28] sm:$0xf]
    %v79 = vld [vmem:[#allocation7 + $0x2c] sm:$0xf]
    %v80 = vld [vmem:[#allocation7 + $0x30] sm:$0xf]
    %v81 = vld [vmem:[#allocation7 + $0x34] sm:$0xf]
    %v82 = vld [vmem:[#allocation7 + $0x38] sm:$0xf]
    %v83 = vld [vmem:[#allocation7 + $0x3c] sm:$0xf]
    %v84 = vld [vmem:[%s3] sm:$0x1]
    %v86 = vlaneseq
    %v87 = vshrl.u32 %v86, 7
    %v88 = vsub.s32 0, %v87
    %v89 = vrot.slane %v84, %v88
    %v93 = vunpack.c.l.b16 %v66
    %v94 = vunpack.c.l.b16 %v67
    %v95 = vpack.c.b16 %v94, %v93
    %v113 = vunpack.c.l.b16 %v68
    %v114 = vunpack.c.l.b16 %v69
    %v115 = vunpack.c.l.b16 %v70
    %v116 = vunpack.c.l.b16 %v71
    %v117 = vunpack.c.l.b16 %v72
    %v118 = vunpack.c.l.b16 %v73
    %v119 = vunpack.c.l.b16 %v74
    %v120 = vunpack.c.l.b16 %v75
    %v121 = vunpack.c.l.b16 %v76
    %v122 = vunpack.c.l.b16 %v77
    %v123 = vunpack.c.l.b16 %v78
    %v124 = vunpack.c.l.b16 %v79
    %v125 = vunpack.c.l.b16 %v80
    %v126 = vunpack.c.l.b16 %v81
    %v127 = vunpack.c.l.b16 %v82
    %v128 = vunpack.c.l.b16 %v83
    %v129 = vpack.c.b16 %v114, %v113
    %v130 = vpack.c.b16 %v116, %v115
    %v131 = vpack.c.b16 %v118, %v117
    %v132 = vpack.c.b16 %v120, %v119
    %v133 = vpack.c.b16 %v122, %v121
    %v134 = vpack.c.b16 %v124, %v123
    %v135 = vpack.c.b16 %v126, %v125
    %v136 = vpack.c.b16 %v128, %v127
    %145 = vmatprep.subr.bf16.mxu0 0
    %146 = vmatpush1.bf16.msra.mxu0 %v129
    %147 = vmatprep.subr.bf16.mxu0 0
    %148 = vmatpush1.bf16.msra.mxu0 %v130
    %149 = vmatprep.subr.bf16.mxu0 0
    %150 = vmatpush1.bf16.msra.mxu0 %v131
    %151 = vmatprep.subr.bf16.mxu0 0
    %152 = vmatpush1.bf16.msra.mxu0 %v132
    %153 = vmatprep.subr.bf16.mxu0 0
    %154 = vmatpush1.bf16.msra.mxu0 %v133
    %155 = vmatprep.subr.bf16.mxu0 0
    %156 = vmatpush1.bf16.msra.mxu0 %v134
    %157 = vmatprep.subr.bf16.mxu0 0
    %158 = vmatpush1.bf16.msra.mxu0 %v135
    %159 = vmatprep.subr.bf16.mxu0 0
    %160 = vmatpush1.bf16.msra.mxu0 %v136
    %161 = vmatprep.subr.bf16.mxu0 0
    %162 = vmatpush1.bf16.msra.mxu0 0
    %163 = vmatprep.subr.bf16.mxu0 0
    %164 = vmatpush1.bf16.msra.mxu0 0
    %165 = vmatprep.subr.bf16.mxu0 0
    %166 = vmatpush1.bf16.msra.mxu0 0
    %167 = vmatprep.subr.bf16.mxu0 0
    %168 = vmatpush1.bf16.msra.mxu0 0
    %169 = vmatprep.subr.bf16.mxu0 0
    %170 = vmatpush1.bf16.msra.mxu0 0
    %171 = vmatprep.subr.bf16.mxu0 0
    %172 = vmatpush1.bf16.msra.mxu0 0
    %173 = vmatprep.subr.bf16.mxu0 0
    %174 = vmatpush1.bf16.msra.mxu0 0
    %175 = vmatprep.subr.bf16.mxu0 0
    %176 = vmatpush1.bf16.msra.mxu0 0
    %177 = vmatprep.mubr.bf16.mxu0 0
    %178 = vmatmul.mubr.bf16.gmra.mrb[0].mxu0 %v95
    %v179 = vpop.f32.mrb[0].mxu0
    %v180 = vadd.f32 %v89, %v179
    %v181 = vpop.f32.mrb[0].mxu0
    %v182 = vpop.f32.mrb[0].mxu0
    %v183 = vadd.f32 %v89, %v182
    %v184 = vpop.f32.mrb[0].mxu0
    %185 = vdwg.mxu0
    %v186 = vld [vmem:[#allocation5] sm:$0xff]
    %v187 = vld [vmem:[#allocation5 + $0x8] sm:$0xff]
    %v188 = vadd.f32 %v180, %v186
    %v189 = vadd.f32 %v183, %v187
    %v190 = vlaneseq
    %v191 = vand.u32 %v190, 127
    %vm192 = vcmp.lt.s32.totalorder %v191, 32
    %v193 = vsel %vm192, 1, 0
    %vm194 = vcmp.eq.s32.totalorder %v193, 1
    %v195 = vsel %vm194, %v188, 0.0
    %v196 = vsel %vm194, %v189, 0.0
    %197 = vadd.xlane.f32.xlu0 %v195
    %v198 = vpop.xlane.xlu0 %197
    %199 = vadd.xlane.f32.xlu0 %v196
    %v200 = vpop.xlane.xlu0 %199
    %v201 = vmul.f32 %v198, 0.03125
    %v202 = vmul.f32 %v200, 0.03125
    %v203 = vsub.f32 %v195, %v201
    %v204 = vsub.f32 %v196, %v202
    %v205 = vsel %vm194, %v203, 0.0
    %v206 = vsel %vm194, %v204, 0.0
    %v207 = vmul.f32 %v205, %v205
    %v208 = vmul.f32 %v206, %v206
    %209 = vadd.xlane.f32.xlu0 %v207
    %v210 = vpop.xlane.xlu0 %209
    %211 = vadd.xlane.f32.xlu0 %v208
    %v212 = vpop.xlane.xlu0 %211
    %v213 = vmul.f32 %v210, 0.03125
    %v214 = vmul.f32 %v212, 0.03125
    %v215 = vadd.f32 %v213, 1e-05
    %v216 = vadd.f32 %v214, 1e-05
    %v217 = vrsqrt.pop %v215
    %v218 = vrsqrt.pop %v216
    %v219 = vmul.f32 %v205, %v217
    %v220 = vmul.f32 %v206, %v218
    %v221 = vld [vmem:[%s4] sm:$0x1]
    %v223 = vlaneseq
    %v224 = vshrl.u32 %v223, 7
    %v225 = vsub.s32 0, %v224
    %v226 = vrot.slane %v221, %v225
    %v228 = vmul.f32 %v219, %v226
    %v229 = vmul.f32 %v220, %v226
    %v230 = vld [vmem:[%s5] sm:$0x1]
    %v232 = vlaneseq
    %v233 = vshrl.u32 %v232, 7
    %v234 = vsub.s32 0, %v233
    %v235 = vrot.slane %v230, %v234
    %v237 = vadd.f32 %v228, %v235
    %v238 = vadd.f32 %v229, %v235
    %239 = vst [vmem:[#allocation8] sm:$0xff] %v237
    %240 = vst [vmem:[#allocation8 + $0x8] sm:$0xff] %v238
    // Predicated region
    $region38: #{tpu_custom_call.1} parent=1 // pred_check
      _
    $region39: #{tpu_custom_call.1} parent=1 // pred_check_branch
      %242 = sbr.rel (0) target = $region41
    $region40: #{tpu_custom_call.1} parent=1 // pred_region
      %s244 = ssub.s32 256, 256
      %245 = vsyncadd [#allocation4], %s244
      %s246 = sshll.u32 [#allocation8], 4
      %s247 = int_to_ptr.vmem [resolvable:$true] %s246
      %252 = dma.vmem_to_hbm [thread:$0]  %s247, 256, %s6, [#allocation4], 128, 128, 8
    $region41: #{tpu_custom_call.1} parent=1 // pred_fallthru
      _
    // Predicated region
    $region42: #{tpu_custom_call.1} parent=1 // pred_check
      _
    $region43: #{tpu_custom_call.1} parent=1 // pred_check_branch
      %254 = sbr.rel (0) target = $region45
    $region44: #{tpu_custom_call.1} parent=1 // pred_region
      %255 = dma.done [#allocation4], 256
    $region45: #{tpu_custom_call.1} parent=1 // pred_fallthru
      _
    %256 = vsyncpa [#allocation3], 1
    %257 = vsyncpa [#allocation6], 1
    %258 = vsyncpa [#allocation4], 1

</llo_original>
